<compile_context>
chip_gen: v7x
topology: tpu7x:2x2x1
jax: 0.10.0
libtpu: 0.0.40
codegen_flags: <defaults>
</compile_context>

<pallas_src>
import functools

import jax
import jax.numpy as jnp
from jax.experimental import pallas as pl
from jax.experimental.pallas import tpu as pltpu


def _vmem_capacity_bytes():
    """Per-TensorCore VMEM capacity; conservative fallback (v7x-like 64 MiB)."""
    try:
        return int(pltpu.get_tpu_info().vmem_capacity_bytes)
    except Exception:
        return 64 * 1024 * 1024


def _pick_batch_tile(batch, classes, itemsize, residency_budget_bytes):
    """Largest batch tile whose total VMEM residency fits the budget.

    Per batch row: 2x double-buffered logits (input dtype) + ~4x (TB,C) f32
    intermediates (x, xm, exp, picked) + lane-padded labels / (TB,128) dot outs.
    """
    per_row = (2 * classes * itemsize      # double-buffered logits block
               + 4 * classes * 4           # f32 intermediates
               + 4 * 128 * 4)              # lane-padded labels + dot outputs
    rows = max(1, residency_budget_bytes // per_row)
    packing = max(8, 32 // itemsize)       # dtype-native sublane packing
    if rows >= batch:
        return batch                       # full dim: always a legal block shape
    return max(packing, (rows // packing) * packing)


def _ce_partial_kernel(logits_ref, labels_ref, out_ref, *,
                       true_b, tb, bpc, use_mxu):
    """Accumulate (NLL sum, valid count) for one (core-split, level, batch-tile)."""
    c = pl.program_id(0)                   # core-split index (v7x megacore)
    b = pl.program_id(2)                   # batch-tile index within the split

    @pl.when(b == 0)
    def _():
        out_ref[...] = jnp.zeros_like(out_ref)

    gb = c * bpc + b                       # global (unclamped) batch-tile index

    # Skip tiles that are entirely past the batch (clamped/duplicated tail).
    @pl.when(gb * tb < true_b)
    def _():
        x = logits_ref[0].astype(jnp.float32)     # (TB, C): f32 math in-kernel
        lab = labels_ref[0]                       # (TB, 1) int32 class indices

        # Numerically stable fused pass; row max is the only XLU lane-reduce.
        m = jnp.max(x, axis=-1, keepdims=True)
        xm = x - m
        e = jnp.exp(xm)
        onehot = jax.lax.broadcasted_iota(jnp.int32, x.shape, 1) == lab
        picked = jnp.where(onehot, xm, 0.0)

        if use_mxu:
            # Offload the two lane sums to the (otherwise idle) MXU.
            ones = jnp.ones((x.shape[1], 128), jnp.float32)
            sum_e = jnp.dot(e, ones, preferred_element_type=jnp.float32,
                            precision=jax.lax.Precision.HIGHEST)[:, 0:1]
            picked_m = jnp.dot(picked, ones, preferred_element_type=jnp.float32,
                               precision=jax.lax.Precision.HIGHEST)[:, 0:1]
        else:
            sum_e = jnp.sum(e, axis=-1, keepdims=True)
            picked_m = jnp.sum(picked, axis=-1, keepdims=True)

        per_example = jnp.log(sum_e) - picked_m   # == logsumexp(x) - x[label]

        # Mask ragged-tile rows and ignored labels (<0 covers PyTorch's -100).
        row = jax.lax.broadcasted_iota(jnp.int32, (tb, 1), 0) + gb * tb
        valid = (row < true_b) & (lab >= 0)
        loss_sum = jnp.sum(jnp.where(valid, per_example, 0.0))
        count = jnp.sum(valid.astype(jnp.float32))

        # Lane-dense accumulator row: lane 0 = NLL sum, lane 1 = valid count.
        lane = jax.lax.broadcasted_iota(jnp.int32, (1, 1, 1, 128), 3)
        out_ref[...] += jnp.where(lane == 0, loss_sum,
                                  jnp.where(lane == 1, count, 0.0))


def custom_cross_entropy_loss(level_prob, level_label, weight=None,
                              vmem_budget_bytes=None):
    """Weighted sum over levels of mean cross-entropy (PyTorch F.cross_entropy).

    level_prob : list of (B, C) logits, or a pre-stacked (L, B, C) array.
    level_label: list of (B,) int labels, or a pre-stacked (L, B) array.
    """
    if isinstance(level_prob, (list, tuple)):
        logits = jnp.stack(level_prob, axis=0)       # keep input dtype (bf16 ok)
    else:
        logits = level_prob
    if isinstance(level_label, (list, tuple)):
        labels = jnp.stack(level_label, axis=0)
    else:
        labels = level_label
    labels = labels.astype(jnp.int32)[..., None]     # (L, B, 1)

    L, B, C = logits.shape
    if weight is None:
        weight = [1.0 / L] * L
    itemsize = logits.dtype.itemsize

    capacity = _vmem_capacity_bytes()
    if vmem_budget_bytes is None:
        # ~half of per-core VMEM for the pipelined working set:
        # ~32 MiB on v7x (64 MiB/TC), 64 MiB cap on v5e/v6e (128 MiB).
        vmem_budget_bytes = min(capacity // 2, 64 << 20)

    tb = _pick_batch_tile(B, C, itemsize, vmem_budget_bytes)
    n_bt = pl.cdiv(B, tb)

    use_mxu = C <= 4096                    # keep the (C,128) ones operand small
    n_split = 2 if n_bt >= 2 else 1        # shard batch tiles across v7x's 2 TCs
    bpc = pl.cdiv(n_bt, n_split)           # batch tiles per core-split
    last_blk = n_bt - 1

    # Raise the scoped VMEM limit to cover the chosen tile (v5e default: 16 MiB).
    vmem_needed = (2 * tb * C * itemsize + 4 * tb * C * 4 + 4 * tb * 128 * 4
                   + (C * 128 * 4 if use_mxu else 0) + 4 * 128 * 4)
    vmem_limit = int(min(max(int(vmem_needed * 1.25) + (2 << 20), 32 << 20),
                         int(capacity * 0.9)))

    kernel = functools.partial(_ce_partial_kernel, true_b=B, tb=tb, bpc=bpc,
                               use_mxu=use_mxu)

    def _in_map(c, l, b):
        # Clamp so a ragged split never produces an out-of-range block; the
        # duplicated tail tile is skipped inside the kernel via pl.when.
        return (l, jnp.minimum(c * bpc + b, last_blk), 0)

    partials = pl.pallas_call(
        kernel,
        out_shape=jax.ShapeDtypeStruct((n_split, L, 1, 128), jnp.float32),
        grid_spec=pl.GridSpec(
            grid=(n_split, L, bpc),
            in_specs=[
                pl.BlockSpec((1, tb, C), _in_map),
                pl.BlockSpec((1, tb, 1), _in_map),
            ],
            out_specs=pl.BlockSpec((1, 1, 1, 128), lambda c, l, b: (c, l, 0, 0)),
        ),
        compiler_params=pltpu.CompilerParams(
            # core-split and level axes are independent (megacore-shardable);
            # the batch-tile axis accumulates into the resident output block.
            dimension_semantics=("parallel", "parallel", "arbitrary"),
            vmem_limit_bytes=vmem_limit,
        ),
        cost_estimate=pl.CostEstimate(
            flops=10 * L * B * C,
            transcendentals=L * B * (C + 1),
            bytes_accessed=L * B * C * itemsize + L * B * 4 + n_split * L * 512,
        ),
    )(logits, labels)

    sums = jnp.sum(partials[:, :, 0, 0], axis=0)     # (L,) per-level NLL sums
    counts = jnp.sum(partials[:, :, 0, 1], axis=0)   # (L,) per-level valid counts
    w = jnp.asarray(weight, dtype=jnp.float32)
    # NOTE: a level whose labels are all ignored yields NaN (0/0), matching PyTorch.
    return jnp.sum(w * sums / counts)


# ----------------------------- references ---------------------------------

def _reference_loss(level_prob, level_label, weight):
    total = jnp.float32(0.0)
    for l in range(len(level_prob)):
        logp = jax.nn.log_softmax(level_prob[l].astype(jnp.float32), axis=-1)
        nll = -jnp.take_along_axis(logp, level_label[l][:, None], axis=-1)[:, 0]
        total = total + weight[l] * jnp.mean(nll)
    return total


def _reference_loss_ignore(level_prob, level_label, weight, ignore_index=-100):
    total = jnp.float32(0.0)
    for l in range(len(level_prob)):
        logp = jax.nn.log_softmax(level_prob[l].astype(jnp.float32), axis=-1)
        lab = level_label[l]
        valid = lab != ignore_index
        safe = jnp.where(valid, lab, 0)
        nll = -jnp.take_along_axis(logp, safe[:, None], axis=-1)[:, 0]
        total = total + weight[l] * (jnp.sum(jnp.where(valid, nll, 0.0))
                                     / jnp.sum(valid))
    return total


if __name__ == "__main__":
    level_num = 3
    batch = 8
    num_classes = 16

    key = jax.random.PRNGKey(0)
    level_prob, level_label = [], []
    for _ in range(level_num):
        key, k1, k2 = jax.random.split(key, 3)
        level_prob.append(jax.random.normal(k1, (batch, num_classes), dtype=jnp.float32))
        level_label.append(jax.random.randint(k2, (batch,), 0, num_classes, dtype=jnp.int32))
    weight = [1.0 / level_num] * level_num

    # 1) f32 logits, whole batch in one tile (auto VMEM budget).
    loss = jax.block_until_ready(custom_cross_entropy_loss(level_prob, level_label, weight))
    ref = jax.block_until_ready(_reference_loss(level_prob, level_label, weight))
    assert jnp.allclose(loss, ref, atol=2e-5, rtol=2e-5), (loss, ref)

    # 2) bf16 logits in HBM (halved DMA bytes), f32 math inside the kernel.
    lp_bf16 = [p.astype(jnp.bfloat16) for p in level_prob]
    loss_bf16 = jax.block_until_ready(custom_cross_entropy_loss(lp_bf16, level_label, weight))
    ref_bf16 = jax.block_until_ready(_reference_loss(lp_bf16, level_label, weight))
    assert jnp.allclose(loss_bf16, ref_bf16, atol=1e-3, rtol=1e-3), (loss_bf16, ref_bf16)

    # 3) tiny forced budget -> TB=8 over B=20 -> 3 batch tiles -> 2-way core
    #    split with a ragged (clamped + skipped) tail tile, plus ignore_index.
    batch2 = 20
    key, k1, k2 = jax.random.split(key, 3)
    lp2 = [jax.random.normal(jax.random.fold_in(k1, l), (batch2, num_classes),
                             dtype=jnp.float32) for l in range(level_num)]
    ll2 = [jax.random.randint(jax.random.fold_in(k2, l), (batch2,), 0, num_classes,
                              dtype=jnp.int32) for l in range(level_num)]
    ll2[1] = ll2[1].at[3].set(-100)   # one ignored example
    loss2 = jax.block_until_ready(
        custom_cross_entropy_loss(lp2, ll2, weight, vmem_budget_bytes=2048))
    ref2 = jax.block_until_ready(_reference_loss_ignore(lp2, ll2, weight))
    assert jnp.allclose(loss2, ref2, atol=2e-5, rtol=2e-5), (loss2, ref2)

    print("KERNEL_OK")
</pallas_src>

<mosaic_0001>
module attributes {stable_mosaic.version = 11 : i64} {
  func.func @_ce_partial_kernel(%arg0: i32, %arg1: i32, %arg2: i32, %arg3: memref<1x8x16xf32, #tpu.memory_space<vmem>>, %arg4: memref<1x8x1xi32, #tpu.memory_space<vmem>>, %arg5: memref<1x1x1x128xf32, #tpu.memory_space<vmem>>) attributes {dimension_semantics = [#tpu.dimension_semantics<parallel>, #tpu.dimension_semantics<parallel>, #tpu.dimension_semantics<arbitrary>], iteration_bounds = array<i64: 1, 3, 1>, scalar_prefetch = 0 : i64, scratch_operands = 0 : i64, tpu.core_type = #tpu.core_type<tc>, window_params = [{transform_indices = @transform_0, window_bounds = array<i64: 1, 8, 16>}, {transform_indices = @transform_1, window_bounds = array<i64: 1, 8, 1>}, {transform_indices = @transform_2, window_bounds = array<i64: 1, 1, 1, 128>}]} {
    %c0_i32 = arith.constant 0 : i32
    %0 = arith.cmpi eq, %arg2, %c0_i32 : i32
    %1 = arith.extui %0 : i1 to i32
    %c0_i32_0 = arith.constant 0 : i32
    %2 = arith.cmpi ne, %1, %c0_i32_0 : i32
    scf.if %2 {
      %cst = arith.constant 0.000000e+00 : f32
      %9 = vector.broadcast %cst : f32 to vector<1x1x1x128xf32>
      %c0 = arith.constant 0 : index
      %c0_3 = arith.constant 0 : index
      %c0_4 = arith.constant 0 : index
      %c0_5 = arith.constant 0 : index
      %10 = vector.load %arg5[%c0, %c0_3, %c0_4, %c0_5] : memref<1x1x1x128xf32, #tpu.memory_space<vmem>>, vector<1x1x1x128xf32>
      tpu.vector_store %arg5[%c0, %c0_3, %c0_4, %c0_5], %9 {strides = array<i32>} : memref<1x1x1x128xf32, #tpu.memory_space<vmem>>, vector<1x1x1x128xf32>,
    } else {
    }
    %c1_i32 = arith.constant 1 : i32
    %3 = arith.muli %arg0, %c1_i32 : i32
    %4 = arith.addi %3, %arg2 : i32
    %c8_i32 = arith.constant 8 : i32
    %5 = arith.muli %4, %c8_i32 : i32
    %c8_i32_1 = arith.constant 8 : i32
    %6 = arith.cmpi slt, %5, %c8_i32_1 : i32
    %7 = arith.extui %6 : i1 to i32
    %c0_i32_2 = arith.constant 0 : i32
    %8 = arith.cmpi ne, %7, %c0_i32_2 : i32
    scf.if %8 {
      %c0 = arith.constant 0 : index
      %c0_3 = arith.constant 0 : index
      %c0_4 = arith.constant 0 : index
      %9 = vector.load %arg3[%c0, %c0_3, %c0_4] : memref<1x8x16xf32, #tpu.memory_space<vmem>>, vector<1x8x16xf32>
      %10 = vector.shape_cast %9 : vector<1x8x16xf32> to vector<8x16xf32>
      %c0_5 = arith.constant 0 : index
      %c0_6 = arith.constant 0 : index
      %c0_7 = arith.constant 0 : index
      %11 = vector.load %arg4[%c0_5, %c0_6, %c0_7] : memref<1x8x1xi32, #tpu.memory_space<vmem>>, vector<1x8x1xi32>
      %12 = vector.shape_cast %11 : vector<1x8x1xi32> to vector<8x1xi32>
      %cst = arith.constant dense<0xFF800000> : vector<8xf32>
      %13 = vector.multi_reduction <maximumf>, %10, %cst [1] : vector<8x16xf32> to vector<8xf32>
      %14 = vector.shape_cast %13 : vector<8xf32> to vector<8x1xf32>
      %15 = vector.broadcast %14 : vector<8x1xf32> to vector<8x16xf32>
      %16 = arith.subf %10, %15 : vector<8x16xf32>
      %17 = math.exp %16 : vector<8x16xf32>
      %18 = tpu.iota {dimensions = array<i32: 1>} : vector<8x16xi32>
      %19 = vector.broadcast %12 : vector<8x1xi32> to vector<8x16xi32>
      %20 = arith.cmpi eq, %18, %19 : vector<8x16xi32>
      %cst_8 = arith.constant 0.000000e+00 : f32
      %21 = vector.broadcast %cst_8 : f32 to vector<8x16xf32>
      %22 = arith.select %20, %16, %21 : vector<8x16xi1>, vector<8x16xf32>
      %cst_9 = arith.constant 1.000000e+00 : f32
      %23 = vector.broadcast %cst_9 : f32 to vector<16x128xf32>
      %cst_10 = arith.constant dense<0.000000e+00> : vector<8x128xf32>
      %24 = tpu.matmul %17, %23, %cst_10 {dimension_numbers = #tpu.dot_dimension_numbers<[1], [0], [0], [1], [0, 0, 1, 1], [], []>, precision = #tpu.contract_precision<fp32>} : vector<8x16xf32>, vector<16x128xf32>, vector<8x128xf32> -> vector<8x128xf32>
      %25 = vector.extract_strided_slice %24 {offsets = [0, 0], sizes = [8, 1], strides = [1, 1]} : vector<8x128xf32> to vector<8x1xf32>
      %cst_11 = arith.constant dense<0.000000e+00> : vector<8x128xf32>
      %26 = tpu.matmul %22, %23, %cst_11 {dimension_numbers = #tpu.dot_dimension_numbers<[1], [0], [0], [1], [0, 0, 1, 1], [], []>, precision = #tpu.contract_precision<fp32>} : vector<8x16xf32>, vector<16x128xf32>, vector<8x128xf32> -> vector<8x128xf32>
      %27 = vector.extract_strided_slice %26 {offsets = [0, 0], sizes = [8, 1], strides = [1, 1]} : vector<8x128xf32> to vector<8x1xf32>
      %28 = math.log %25 : vector<8x1xf32>
      %29 = arith.subf %28, %27 : vector<8x1xf32>
      %30 = tpu.iota {dimensions = array<i32: 0>} : vector<8x1xi32>
      %c8_i32_12 = arith.constant 8 : i32
      %31 = arith.muli %4, %c8_i32_12 : i32
      %32 = vector.broadcast %31 : i32 to vector<8x1xi32>
      %33 = arith.addi %30, %32 : vector<8x1xi32>
      %c8_i32_13 = arith.constant 8 : i32
      %34 = vector.broadcast %c8_i32_13 : i32 to vector<8x1xi32>
      %35 = arith.cmpi slt, %33, %34 : vector<8x1xi32>
      %c0_i32_14 = arith.constant 0 : i32
      %36 = vector.broadcast %c0_i32_14 : i32 to vector<8x1xi32>
      %37 = arith.cmpi sge, %12, %36 : vector<8x1xi32>
      %38 = arith.andi %35, %37 : vector<8x1xi1>
      %cst_15 = arith.constant 0.000000e+00 : f32
      %39 = vector.broadcast %cst_15 : f32 to vector<8x1xf32>
      %40 = arith.select %38, %29, %39 : vector<8x1xi1>, vector<8x1xf32>
      %41 = vector.shape_cast %40 : vector<8x1xf32> to vector<1x8x1xf32>
      %cst_16 = arith.constant dense<0.000000e+00> : vector<1xf32>
      %42 = vector.multi_reduction <add>, %41, %cst_16 [1, 2] : vector<1x8x1xf32> to vector<1xf32>
      %43 = vector.shape_cast %42 : vector<1xf32> to vector<1x1x1xf32>
      %44 = vector.extract %43[0, 0, 0] : f32 from vector<1x1x1xf32>
      %45 = arith.extui %38 : vector<8x1xi1> to vector<8x1xi32>
      %46 = arith.sitofp %45 : vector<8x1xi32> to vector<8x1xf32>
      %47 = vector.shape_cast %46 : vector<8x1xf32> to vector<1x8x1xf32>
      %cst_17 = arith.constant dense<0.000000e+00> : vector<1xf32>
      %48 = vector.multi_reduction <add>, %47, %cst_17 [1, 2] : vector<1x8x1xf32> to vector<1xf32>
      %49 = vector.shape_cast %48 : vector<1xf32> to vector<1x1x1xf32>
      %50 = vector.extract %49[0, 0, 0] : f32 from vector<1x1x1xf32>
      %51 = tpu.iota {dimensions = array<i32: 3>} : vector<1x1x1x128xi32>
      %c0_18 = arith.constant 0 : index
      %c0_19 = arith.constant 0 : index
      %c0_20 = arith.constant 0 : index
      %c0_21 = arith.constant 0 : index
      %52 = vector.load %arg5[%c0_18, %c0_19, %c0_20, %c0_21] : memref<1x1x1x128xf32, #tpu.memory_space<vmem>>, vector<1x1x1x128xf32>
      %c0_i32_22 = arith.constant 0 : i32
      %53 = vector.broadcast %c0_i32_22 : i32 to vector<1x1x1x128xi32>
      %54 = arith.cmpi eq, %51, %53 : vector<1x1x1x128xi32>
      %c1_i32_23 = arith.constant 1 : i32
      %55 = vector.broadcast %c1_i32_23 : i32 to vector<1x1x1x128xi32>
      %56 = arith.cmpi eq, %51, %55 : vector<1x1x1x128xi32>
      %cst_24 = arith.constant 0.000000e+00 : f32
      %57 = vector.broadcast %50 : f32 to vector<1x1x1x128xf32>
      %58 = vector.broadcast %cst_24 : f32 to vector<1x1x1x128xf32>
      %59 = arith.select %56, %57, %58 : vector<1x1x1x128xi1>, vector<1x1x1x128xf32>
      %60 = vector.broadcast %44 : f32 to vector<1x1x1x128xf32>
      %61 = arith.select %54, %60, %59 : vector<1x1x1x128xi1>, vector<1x1x1x128xf32>
      %62 = arith.addf %52, %61 : vector<1x1x1x128xf32>
      %c0_25 = arith.constant 0 : index
      %c0_26 = arith.constant 0 : index
      %c0_27 = arith.constant 0 : index
      %c0_28 = arith.constant 0 : index
      %63 = vector.load %arg5[%c0_25, %c0_26, %c0_27, %c0_28] : memref<1x1x1x128xf32, #tpu.memory_space<vmem>>, vector<1x1x1x128xf32>
      tpu.vector_store %arg5[%c0_25, %c0_26, %c0_27, %c0_28], %62 {strides = array<i32>} : memref<1x1x1x128xf32, #tpu.memory_space<vmem>>, vector<1x1x1x128xf32>,
    } else {
    }
    return
  }
  func.func @transform_0(%arg0: i32, %arg1: i32, %arg2: i32) -> (i32, i32, i32) {
    %c1_i32 = arith.constant 1 : i32
    %0 = arith.muli %arg0, %c1_i32 : i32
    %1 = arith.addi %0, %arg2 : i32
    %c0_i32 = arith.constant 0 : i32
    %2 = arith.minsi %1, %c0_i32 : i32
    %c0_i32_0 = arith.constant 0 : i32
    %c0_i32_1 = arith.constant 0 : i32
    return %arg1, %2, %c0_i32_0 : i32, i32, i32
  }
  func.func @transform_1(%arg0: i32, %arg1: i32, %arg2: i32) -> (i32, i32, i32) {
    %c1_i32 = arith.constant 1 : i32
    %0 = arith.muli %arg0, %c1_i32 : i32
    %1 = arith.addi %0, %arg2 : i32
    %c0_i32 = arith.constant 0 : i32
    %2 = arith.minsi %1, %c0_i32 : i32
    %c0_i32_0 = arith.constant 0 : i32
    %c0_i32_1 = arith.constant 0 : i32
    return %arg1, %2, %c0_i32_0 : i32, i32, i32
  }
  func.func @transform_2(%arg0: i32, %arg1: i32, %arg2: i32) -> (i32, i32, i32, i32) {
    %c0_i32 = arith.constant 0 : i32
    %c0_i32_0 = arith.constant 0 : i32
    %c0_i32_1 = arith.constant 0 : i32
    return %arg0, %arg1, %c0_i32, %c0_i32_0 : i32, i32, i32, i32
  }
}

</mosaic_0001>

<llo_original>
// kernel: tpu_custom_call.1
$region0: #{tpu_custom_call.1}
  #allocation0 [shape = 'u32[]', space=smem, size = 0x4, offset = 0x4, fixed_abs, tag = 'smem constant byte address 0x4 - core index']
  #allocation1 [shape = 'u32[144,128]{1,0:T(1,128)}', space=vmem, size = 0x12000, scoped, tag = 'internal scratch']
  %s0 = inlined_call_operand.vmem [shape: f32[3,8,16], index: 0, kind: input, shape index: {}]
  %s1 = inlined_call_operand.vmem [shape: s32[3,8,1], index: 1, kind: input, shape index: {}]
  %s2 = inlined_call_operand.hbm [shape: f32[1,3,1,128], index: 2, kind: output, shape index: {}]
  %s3 = sld [smem:[#allocation0]]
  $region49: #{tpu_custom_call.1} parent=0
    _
  %s5 = ssub.s32 1, %s3
  %s6 = scalar_select 0, %s5, %s3
  $region1: #{tpu_custom_call.1} parent=0
    #allocation2 [shape = 'u8[1024]{0}', space=vmem, size = 0x400, scoped, tag = 'output window, operand 0']
    #allocation3 [shape = 's32[2]{0}', space=sflag, size = 0x8, scoped, tag = 'scoped memory for tpu_custom_call.1']
    %7 = vsyncpa [#allocation3], 0
    %s8 = scalar_lea.sflag [#allocation3], 1
    %9 = vsyncpa %s8, 0
    loop: start=0, step=1, limit=5
    $region2: #{tpu_custom_call.1} parent=1 // loop_pre_header
      _
    $region3: #{tpu_custom_call.1} parent=1 // loop_header
      %s11 = sphi 0, %s15
      %p12 = scmp.ge.s32.totalorder %s11, 5
      %s18 = sphi 0, %s37
      %s19 = sphi 0, %s33
      %s20 = sphi 0, %s29
      %s21 = sphi 0, %s18
      %s22 = sphi 0, %s19
      %s23 = sphi 0, %s20
      %s24 = sphi 0, %s21
      %s25 = sphi 0, %s22
      %s26 = sphi 0, %s23
      %s48 = sphi 0, %s50
      %s51 = sphi 0, %s48
      %s52 = sphi 0, %s51
      %s68 = sphi 0, %s52
      %s82 = sphi 0, %s84
      %s85 = sphi 0, %s82
      %s86 = sphi 0, %s85
      %s102 = sphi 0, %s86
      %s110 = sphi 0, %s112
      %s113 = sphi 0, %s110
      %s114 = sphi 0, %s113
      %s130 = sphi 0, %s114
    $region4: #{tpu_custom_call.1} parent=1 // loop_header_branch
      %14 = sbr.rel (%p12) target = $region8
    $region5: #{tpu_custom_call.1} parent=1 // loop_body
      %s16 = ssub.s32 %s11, 1
      %s17 = ssub.s32 %s11, 2
      %s27 = sadd.s32 1, %s20
      %p28 = scmp.ge.s32.totalorder %s27, 1
      %s29 = scalar_select %p28, 0, %s27
      %s30 = sadd.s32 1, %s19
      %s31 = scalar_select %p28, %s30, %s19
      %p32 = scmp.ge.s32.totalorder %s31, 3
      %s33 = scalar_select %p32, 0, %s31
      %s34 = sadd.s32 1, %s18
      %s35 = scalar_select %p32, %s34, %s18
      %p36 = scmp.ge.s32.totalorder %s35, 1
      %s37 = scalar_select %p36, 0, %s35
      %s38 = sadd.s32 %s18, %s20
      %p39 = scmp.lt.s32.totalorder %s38, 0
      %s40 = scalar_select %p39, %s38, 0
      %s41 = sadd.s32 %s37, %s29
      %p42 = scmp.lt.s32.totalorder %s41, 0
      %s43 = scalar_select %p42, %s41, 0
      %s44 = ssub.s32 %s19, %s33
      %s45 = ssub.s32 %s40, %s43
      %s46 = sor.u32 %s44, %s45
      %p47 = scmp.eq.s32.totalorder %s46, 0
      %s49 = sadd.s32 %s48, 1
      %s50 = scalar_select %p47, %s48, %s49
      %p53 = pneg %p47
      %p54 = scmp.eq.s32.totalorder %s11, 2
      %p55 = por %p53, %p54
      %p56 = scmp.ne.s32.totalorder %s48, %s51
      %p57 = scmp.eq.s32.totalorder %s11, 0
      %p58 = por %p56, %p57
      %p59 = scmp.ne.s32.totalorder %s48, %s51
      %p60 = scmp.eq.s32.totalorder %s16, 2
      %p61 = por %p59, %p60
      %p62 = scmp.ne.s32.totalorder %s51, %s52
      %p63 = scmp.eq.s32.totalorder %s16, 0
      %p64 = por %p62, %p63
      %p65 = scmp.ne.s32.totalorder %s51, %s52
      %p66 = scmp.eq.s32.totalorder %s17, 2
      %p67 = por %p65, %p66
      %p69 = scmp.ne.s32.totalorder %s52, %s68
      %p70 = scmp.eq.s32.totalorder %s17, 0
      %p71 = por %p69, %p70
      %s72 = sadd.s32 %s18, %s20
      %p73 = scmp.lt.s32.totalorder %s72, 0
      %s74 = scalar_select %p73, %s72, 0
      %s75 = sadd.s32 %s37, %s29
      %p76 = scmp.lt.s32.totalorder %s75, 0
      %s77 = scalar_select %p76, %s75, 0
      %s78 = ssub.s32 %s19, %s33
      %s79 = ssub.s32 %s74, %s77
      %s80 = sor.u32 %s78, %s79
      %p81 = scmp.eq.s32.totalorder %s80, 0
      %s83 = sadd.s32 %s82, 1
      %s84 = scalar_select %p81, %s82, %s83
      %p87 = pneg %p81
      %p88 = scmp.eq.s32.totalorder %s11, 2
      %p89 = por %p87, %p88
      %p90 = scmp.ne.s32.totalorder %s82, %s85
      %p91 = scmp.eq.s32.totalorder %s11, 0
      %p92 = por %p90, %p91
      %p93 = scmp.ne.s32.totalorder %s82, %s85
      %p94 = scmp.eq.s32.totalorder %s16, 2
      %p95 = por %p93, %p94
      %p96 = scmp.ne.s32.totalorder %s85, %s86
      %p97 = scmp.eq.s32.totalorder %s16, 0
      %p98 = por %p96, %p97
      %p99 = scmp.ne.s32.totalorder %s85, %s86
      %p100 = scmp.eq.s32.totalorder %s17, 2
      %p101 = por %p99, %p100
      %p103 = scmp.ne.s32.totalorder %s86, %s102
      %p104 = scmp.eq.s32.totalorder %s17, 0
      %p105 = por %p103, %p104
      %s106 = ssub.s32 %s18, %s37
      %s107 = ssub.s32 %s19, %s33
      %s108 = sor.u32 %s106, %s107
      %p109 = scmp.eq.s32.totalorder %s108, 0
      %s111 = sadd.s32 %s110, 1
      %s112 = scalar_select %p109, %s110, %s111
      %p115 = pneg %p109
      %p116 = scmp.eq.s32.totalorder %s11, 2
      %p117 = por %p115, %p116
      %p118 = scmp.ne.s32.totalorder %s110, %s113
      %p119 = scmp.eq.s32.totalorder %s11, 0
      %p120 = por %p118, %p119
      %p121 = scmp.ne.s32.totalorder %s110, %s113
      %p122 = scmp.eq.s32.totalorder %s16, 2
      %p123 = por %p121, %p122
      %p124 = scmp.ne.s32.totalorder %s113, %s114
      %p125 = scmp.eq.s32.totalorder %s16, 0
      %p126 = por %p124, %p125
      %p127 = scmp.ne.s32.totalorder %s113, %s114
      %p128 = scmp.eq.s32.totalorder %s17, 2
      %p129 = por %p127, %p128
      %p131 = scmp.ne.s32.totalorder %s114, %s130
      %p132 = scmp.eq.s32.totalorder %s17, 0
      %p133 = por %p131, %p132
      %p134 = scmp.le.s32.totalorder 1, %s11
      %p135 = scmp.lt.s32.totalorder %s11, 4
      %p136 = pnand %p134, %p135
      %p137 = pneg %p136
      // Predicated region
      $region9: #{tpu_custom_call.1} parent=5 // pred_check
        _
      $region10: #{tpu_custom_call.1} parent=5 // pred_check_branch
        %139 = sbr.rel (%p136) target = $region12
      $region11: #{tpu_custom_call.1} parent=5 // pred_region
        %s140 = ssub.s32 %s11, 1
      $region12: #{tpu_custom_call.1} parent=5 // pred_fallthru
        _
      %p141 = scmp.lt.s32.totalorder %s11, 3
      // Predicated region
      $region13: #{tpu_custom_call.1} parent=5 // pred_check
        %p142 = pneg %p141
      $region14: #{tpu_custom_call.1} parent=5 // pred_check_branch
        %144 = sbr.rel (%p142) target = $region16
      $region15: #{tpu_custom_call.1} parent=5 // pred_region
        // Predicated region
        $region17: #{tpu_custom_call.1} parent=15 // pred_check
          %p145 = pneg %p58
        $region18: #{tpu_custom_call.1} parent=15 // pred_check_branch
          %147 = sbr.rel (%p145) target = $region20
        $region19: #{tpu_custom_call.1} parent=15 // pred_region
          %s148 = sadd.s32 %s18, %s20
          %p149 = scmp.lt.s32.totalorder %s148, 0
          %s150 = scalar_select %p149, %s148, 0
          %p151 = scmp.lt.s32.totalorder %s19, 2
          %s152 = scalar_select %p151, %s19, 2
          %p153 = scmp.lt.s32.totalorder %s150, 0
          %s154 = scalar_select %p153, %s150, 0
          %s155 = sadd.s32 %s154, %s152
          %s156 = smul.addr %s155, 8
          %s157 = scalar_lea.vmem %s0, %s156
          %s158 = sadd.s32 %s18, %s20
          %p159 = scmp.lt.s32.totalorder %s158, 0
          %s160 = scalar_select %p159, %s158, 0
        $region20: #{tpu_custom_call.1} parent=15 // pred_fallthru
          _
        // Predicated region
        $region21: #{tpu_custom_call.1} parent=15 // pred_check
          %p161 = pneg %p92
        $region22: #{tpu_custom_call.1} parent=15 // pred_check_branch
          %163 = sbr.rel (%p161) target = $region24
        $region23: #{tpu_custom_call.1} parent=15 // pred_region
          %s164 = sadd.s32 %s18, %s20
          %p165 = scmp.lt.s32.totalorder %s164, 0
          %s166 = scalar_select %p165, %s164, 0
          %p167 = scmp.lt.s32.totalorder %s19, 2
          %s168 = scalar_select %p167, %s19, 2
          %p169 = scmp.lt.s32.totalorder %s166, 0
          %s170 = scalar_select %p169, %s166, 0
          %s171 = sadd.s32 %s170, %s168
          %s172 = smul.addr %s171, 8
          %s173 = scalar_lea.vmem %s1, %s172
          %s174 = sadd.s32 %s18, %s20
          %p175 = scmp.lt.s32.totalorder %s174, 0
          %s176 = scalar_select %p175, %s174, 0
        $region24: #{tpu_custom_call.1} parent=15 // pred_fallthru
          _
      $region16: #{tpu_custom_call.1} parent=5 // pred_fallthru
        _
      %p177 = scmp.le.s32.totalorder 1, %s11
      %p178 = scmp.lt.s32.totalorder %s11, 4
      %p179 = pnand %p177, %p178
      %p180 = pneg %p179
      // Predicated region
      $region25: #{tpu_custom_call.1} parent=5 // pred_check
        _
      $region26: #{tpu_custom_call.1} parent=5 // pred_check_branch
        %182 = sbr.rel (%p179) target = $region28
      $region27: #{tpu_custom_call.1} parent=5 // pred_region
        %s183 = ssub.s32 %s11, 1
        %s184 = sadd.s32 %s21, %s23
        %p185 = scmp.lt.s32.totalorder %s184, 0
        %s186 = scalar_select %p185, %s184, 0
        %p187 = scmp.lt.s32.totalorder %s22, 2
        %s188 = scalar_select %p187, %s22, 2
        %p189 = scmp.lt.s32.totalorder %s186, 0
        %s190 = scalar_select %p189, %s186, 0
        %s191 = sadd.s32 %s190, %s188
        %s192 = smul.addr %s191, 8
        %s193 = scalar_lea.vmem %s0, %s192
        %p194 = pneg %p64
        %p195 = pneg %p61
        %s196 = sadd.s32 %s21, %s23
        %p197 = scmp.lt.s32.totalorder %s196, 0
        %s198 = scalar_select %p197, %s196, 0
        %p199 = scmp.lt.s32.totalorder %s22, 2
        %s200 = scalar_select %p199, %s22, 2
        %p201 = scmp.lt.s32.totalorder %s198, 0
        %s202 = scalar_select %p201, %s198, 0
        %s203 = sadd.s32 %s202, %s200
        %s204 = smul.addr %s203, 8
        %s205 = scalar_lea.vmem %s1, %s204
        %p206 = pneg %p98
        %p207 = pneg %p95
        %p208 = pneg %p126
        %p209 = pneg %p123
        %s210 = sand.u32 %s113, 1
        %s211 = scalar_lea.sflag [#allocation3], %s210
        %s212 = sand.u32 %s113, 1
        %s213 = scalar_lea.vmem [#allocation2], %s212
        %s214 = sadd.s32 %s21, %s23
        %p215 = scmp.lt.s32.totalorder %s214, 0
        %s216 = scalar_select %p215, %s214, 0
        %p217 = scmp.lt.s32.totalorder %s22, 2
        %s218 = scalar_select %p217, %s22, 2
        %p219 = scmp.lt.s32.totalorder %s216, 0
        %s220 = scalar_select %p219, %s216, 0
        %s221 = sadd.s32 %s220, %s218
        %s222 = smul.addr %s221, 8
        %s223 = scalar_lea.vmem %s0, %s222
        %s224 = sadd.s32 %s21, %s23
        %p225 = scmp.lt.s32.totalorder %s224, 0
        %s226 = scalar_select %p225, %s224, 0
        %s227 = sadd.s32 %s21, %s23
        %p228 = scmp.lt.s32.totalorder %s227, 0
        %s229 = scalar_select %p228, %s227, 0
        %p230 = scmp.lt.s32.totalorder %s22, 2
        %s231 = scalar_select %p230, %s22, 2
        %p232 = scmp.lt.s32.totalorder %s229, 0
        %s233 = scalar_select %p232, %s229, 0
        %s234 = sadd.s32 %s233, %s231
        %s235 = smul.addr %s234, 8
        %s236 = scalar_lea.vmem %s1, %s235
        %s237 = sadd.s32 %s21, %s23
        %p238 = scmp.lt.s32.totalorder %s237, 0
        %s239 = scalar_select %p238, %s237, 0
        %p240 = scmp.eq.s32.totalorder %s23, 0
        // Predicated region
        $region29: #{tpu_custom_call.1} parent=27 // pred_check
          %p241 = pneg %p240
        $region30: #{tpu_custom_call.1} parent=27 // pred_check_branch
          %243 = sbr.rel (%p241) target = $region32
        $region31: #{tpu_custom_call.1} parent=27 // pred_region
          %244 = vst [vmem:[%s213] sm:$0x1] 0.0
        $region32: #{tpu_custom_call.1} parent=27 // pred_fallthru
          _
        %s245 = sadd.s32 %s21, %s23
        %s246 = smul.u32 %s245, 8
        %p247 = scmp.lt.s32.totalorder %s246, 8
        // Predicated region
        $region33: #{tpu_custom_call.1} parent=27 // pred_check
          %p248 = pneg %p247
        $region34: #{tpu_custom_call.1} parent=27 // pred_check_branch
          %250 = sbr.rel (%p248) target = $region36
        $region35: #{tpu_custom_call.1} parent=27 // pred_region
          %v251 = vld [vmem:[%s223] sm:$0xff]
          %v252 = vld [vmem:[%s236] sm:$0xff]
          %vm253 = vcmask 130048
          %v254 = vsel %vm253, %v251, -inf
          %255 = vmax.xlane.f32.xlu0 %v254
          %v256 = vpop.xlane.xlu0 %255
          %v257 = vsub.f32 %v251, %v256
          %v258 = vmul.f32 %v257, 1.442695
          %v259 = vpow.pop %v258
          %v260 = vlaneseq
          %v261 = vand.u32 %v260, 127
          %262 = vset.pattern.permute.xlu0 0
          %263 = vperm.xlu0 %262, %v252
          %v264 = vpop.permute.xlu0 %263
          %vm265 = vcmp.eq.s32.totalorder %v261, %v264
          %v266 = vsel %vm265, %v257, 0.0
          %v268 = vsel %vm253, %v259, 0
          %270 = vmatprep.subr.mxu0 0.0
          %271 = vmatpush1.msra.mxu0 1.0
          %272 = vmatprep.subr.mxu0 0.0
          %273 = vmatpush1.msra.mxu0 1.0
          %274 = vmatprep.subr.mxu0 0.0
          %275 = vmatpush1.msra.mxu0 0.0
          %276 = vmatprep.subr.mxu0 0.0
          %277 = vmatpush1.msra.mxu0 0.0
          %278 = vmatprep.subr.mxu0 0.0
          %279 = vmatpush1.msra.mxu0 0.0
          %280 = vmatprep.subr.mxu0 0.0
          %281 = vmatpush1.msra.mxu0 0.0
          %282 = vmatprep.subr.mxu0 0.0
          %283 = vmatpush1.msra.mxu0 0.0
          %284 = vmatprep.subr.mxu0 0.0
          %285 = vmatpush1.msra.mxu0 0.0
          %286 = vmatprep.subr.mxu0 0.0
          %287 = vmatpush1.msra.mxu0 0.0
          %288 = vmatprep.subr.mxu0 0.0
          %289 = vmatpush1.msra.mxu0 0.0
          %290 = vmatprep.subr.mxu0 0.0
          %291 = vmatpush1.msra.mxu0 0.0
          %292 = vmatprep.subr.mxu0 0.0
          %293 = vmatpush1.msra.mxu0 0.0
          %294 = vmatprep.subr.mxu0 0.0
          %295 = vmatpush1.msra.mxu0 0.0
          %296 = vmatprep.subr.mxu0 0.0
          %297 = vmatpush1.msra.mxu0 0.0
          %298 = vmatprep.subr.mxu0 0.0
          %299 = vmatpush1.msra.mxu0 0.0
          %300 = vmatprep.subr.mxu0 0.0
          %301 = vmatpush1.msra.mxu0 0.0
          %302 = vmatprep.subr.mxu0 0.0
          %303 = vmatpush1.msra.mxu0 0.0
          %304 = vmatprep.subr.mxu0 0.0
          %305 = vmatpush1.msra.mxu0 0.0
          %306 = vmatprep.subr.mxu0 0.0
          %307 = vmatpush1.msra.mxu0 0.0
          %308 = vmatprep.subr.mxu0 0.0
          %309 = vmatpush1.msra.mxu0 0.0
          %310 = vmatprep.subr.mxu0 0.0
          %311 = vmatpush1.msra.mxu0 0.0
          %312 = vmatprep.subr.mxu0 0.0
          %313 = vmatpush1.msra.mxu0 0.0
          %314 = vmatprep.subr.mxu0 0.0
          %315 = vmatpush1.msra.mxu0 0.0
          %316 = vmatprep.subr.mxu0 0.0
          %317 = vmatpush1.msra.mxu0 0.0
          %318 = vmatprep.subr.mxu0 0.0
          %319 = vmatpush1.msra.mxu0 0.0
          %320 = vmatprep.subr.mxu0 0.0
          %321 = vmatpush1.msra.mxu0 0.0
          %322 = vmatprep.subr.mxu0 0.0
          %323 = vmatpush1.msra.mxu0 0.0
          %324 = vmatprep.subr.mxu0 0.0
          %325 = vmatpush1.msra.mxu0 0.0
          %326 = vmatprep.subr.mxu0 0.0
          %327 = vmatpush1.msra.mxu0 0.0
          %328 = vmatprep.subr.mxu0 0.0
          %329 = vmatpush1.msra.mxu0 0.0
          %330 = vmatprep.subr.mxu0 0.0
          %331 = vmatpush1.msra.mxu0 0.0
          %332 = vmatprep.subr.mxu0 0.0
          %333 = vmatpush1.msra.mxu0 0.0
          %334 = vmatprep.mubr.f32.mxu0 0.0
          %v335 = vand.u32 %v268, 4294901760
          %v336 = vsub.f32 %v268, %v335
          %v337 = vand.u32 %v336, 4294901760
          %v338 = vsub.f32 %v336, %v337
          %v339 = vand.u32 %v338, 4294901760
          %340 = vmatmul.mubr.f32.gmra.mrb[0].mxu0 %v339
          %v341 = vpop.f32.mrb[0].mxu0
          %v342 = vadd.f32 0.0, %v341
          %v343 = vpop.f32.mrb[0].mxu0
          %344 = vdwg.mxu0
          %345 = vmatprep.subr.mxu0 0.0
          %346 = vmatpush1.msra.mxu0 0.0
          %347 = vmatprep.subr.mxu0 0.0
          %348 = vmatpush1.msra.mxu0 0.0
          %349 = vmatprep.subr.mxu0 0.0
          %350 = vmatpush1.msra.mxu0 0.0
          %351 = vmatprep.subr.mxu0 0.0
          %352 = vmatpush1.msra.mxu0 0.0
          %353 = vmatprep.subr.mxu0 0.0
          %354 = vmatpush1.msra.mxu0 0.0
          %355 = vmatprep.subr.mxu0 0.0
          %356 = vmatpush1.msra.mxu0 0.0
          %357 = vmatprep.subr.mxu0 0.0
          %358 = vmatpush1.msra.mxu0 0.0
          %359 = vmatprep.subr.mxu0 0.0
          %360 = vmatpush1.msra.mxu0 0.0
          %361 = vmatprep.subr.mxu0 0.0
          %362 = vmatpush1.msra.mxu0 0.0
          %363 = vmatprep.subr.mxu0 0.0
          %364 = vmatpush1.msra.mxu0 0.0
          %365 = vmatprep.subr.mxu0 0.0
          %366 = vmatpush1.msra.mxu0 0.0
          %367 = vmatprep.subr.mxu0 0.0
          %368 = vmatpush1.msra.mxu0 0.0
          %369 = vmatprep.subr.mxu0 0.0
          %370 = vmatpush1.msra.mxu0 0.0
          %371 = vmatprep.subr.mxu0 0.0
          %372 = vmatpush1.msra.mxu0 0.0
          %373 = vmatprep.subr.mxu0 0.0
          %374 = vmatpush1.msra.mxu0 0.0
          %375 = vmatprep.subr.mxu0 0.0
          %376 = vmatpush1.msra.mxu0 0.0
          %377 = vmatprep.subr.mxu0 0.0
          %378 = vmatpush1.msra.mxu0 0.0
          %379 = vmatprep.subr.mxu0 0.0
          %380 = vmatpush1.msra.mxu0 0.0
          %381 = vmatprep.subr.mxu0 0.0
          %382 = vmatpush1.msra.mxu0 0.0
          %383 = vmatprep.subr.mxu0 0.0
          %384 = vmatpush1.msra.mxu0 0.0
          %385 = vmatprep.subr.mxu0 0.0
          %386 = vmatpush1.msra.mxu0 0.0
          %387 = vmatprep.subr.mxu0 0.0
          %388 = vmatpush1.msra.mxu0 0.0
          %389 = vmatprep.subr.mxu0 0.0
          %390 = vmatpush1.msra.mxu0 0.0
          %391 = vmatprep.subr.mxu0 0.0
          %392 = vmatpush1.msra.mxu0 0.0
          %393 = vmatprep.subr.mxu0 0.0
          %394 = vmatpush1.msra.mxu0 0.0
          %395 = vmatprep.subr.mxu0 0.0
          %396 = vmatpush1.msra.mxu0 0.0
          %397 = vmatprep.subr.mxu0 0.0
          %398 = vmatpush1.msra.mxu0 0.0
          %399 = vmatprep.subr.mxu0 0.0
          %400 = vmatpush1.msra.mxu0 0.0
          %401 = vmatprep.subr.mxu0 0.0
          %402 = vmatpush1.msra.mxu0 0.0
          %403 = vmatprep.subr.mxu0 0.0
          %404 = vmatpush1.msra.mxu0 0.0
          %405 = vmatprep.subr.mxu0 0.0
          %406 = vmatpush1.msra.mxu0 0.0
          %407 = vmatprep.subr.mxu0 0.0
          %408 = vmatpush1.msra.mxu0 0.0
          %409 = vmatprep.mubr.f32.mxu0 0.0
          %v410 = vand.u32 %v268, 4294901760
          %411 = vmatmul.mubr.f32.gmra.mrb[0].mxu0 %v410
          %v412 = vpop.f32.mrb[0].mxu0
          %v413 = vadd.f32 %v342, %v412
          %v414 = vpop.f32.mrb[0].mxu0
          %415 = vdwg.mxu0
          %416 = vmatprep.subr.mxu0 0.0
          %417 = vmatpush1.msra.mxu0 0.0
          %418 = vmatprep.subr.mxu0 0.0
          %419 = vmatpush1.msra.mxu0 0.0
          %420 = vmatprep.subr.mxu0 0.0
          %421 = vmatpush1.msra.mxu0 0.0
          %422 = vmatprep.subr.mxu0 0.0
          %423 = vmatpush1.msra.mxu0 0.0
          %424 = vmatprep.subr.mxu0 0.0
          %425 = vmatpush1.msra.mxu0 0.0
          %426 = vmatprep.subr.mxu0 0.0
          %427 = vmatpush1.msra.mxu0 0.0
          %428 = vmatprep.subr.mxu0 0.0
          %429 = vmatpush1.msra.mxu0 0.0
          %430 = vmatprep.subr.mxu0 0.0
          %431 = vmatpush1.msra.mxu0 0.0
          %432 = vmatprep.subr.mxu0 0.0
          %433 = vmatpush1.msra.mxu0 0.0
          %434 = vmatprep.subr.mxu0 0.0
          %435 = vmatpush1.msra.mxu0 0.0
          %436 = vmatprep.subr.mxu0 0.0
          %437 = vmatpush1.msra.mxu0 0.0
          %438 = vmatprep.subr.mxu0 0.0
          %439 = vmatpush1.msra.mxu0 0.0
          %440 = vmatprep.subr.mxu0 0.0
          %441 = vmatpush1.msra.mxu0 0.0
          %442 = vmatprep.subr.mxu0 0.0
          %443 = vmatpush1.msra.mxu0 0.0
          %444 = vmatprep.subr.mxu0 0.0
          %445 = vmatpush1.msra.mxu0 0.0
          %446 = vmatprep.subr.mxu0 0.0
          %447 = vmatpush1.msra.mxu0 0.0
          %448 = vmatprep.subr.mxu0 0.0
          %449 = vmatpush1.msra.mxu0 0.0
          %450 = vmatprep.subr.mxu0 0.0
          %451 = vmatpush1.msra.mxu0 0.0
          %452 = vmatprep.subr.mxu0 0.0
          %453 = vmatpush1.msra.mxu0 0.0
          %454 = vmatprep.subr.mxu0 0.0
          %455 = vmatpush1.msra.mxu0 0.0
          %456 = vmatprep.subr.mxu0 0.0
          %457 = vmatpush1.msra.mxu0 0.0
          %458 = vmatprep.subr.mxu0 0.0
          %459 = vmatpush1.msra.mxu0 0.0
          %460 = vmatprep.subr.mxu0 0.0
          %461 = vmatpush1.msra.mxu0 0.0
          %462 = vmatprep.subr.mxu0 0.0
          %463 = vmatpush1.msra.mxu0 0.0
          %464 = vmatprep.subr.mxu0 0.0
          %465 = vmatpush1.msra.mxu0 0.0
          %466 = vmatprep.subr.mxu0 0.0
          %467 = vmatpush1.msra.mxu0 0.0
          %468 = vmatprep.subr.mxu0 0.0
          %469 = vmatpush1.msra.mxu0 0.0
          %470 = vmatprep.subr.mxu0 0.0
          %471 = vmatpush1.msra.mxu0 0.0
          %472 = vmatprep.subr.mxu0 0.0
          %473 = vmatpush1.msra.mxu0 0.0
          %474 = vmatprep.subr.mxu0 0.0
          %475 = vmatpush1.msra.mxu0 0.0
          %476 = vmatprep.subr.mxu0 0.0
          %477 = vmatpush1.msra.mxu0 0.0
          %478 = vmatprep.subr.mxu0 0.0
          %479 = vmatpush1.msra.mxu0 0.0
          %480 = vmatprep.mubr.f32.mxu0 0.0
          %v481 = vand.u32 %v268, 4294901760
          %v482 = vsub.f32 %v268, %v481
          %483 = vmatmul.mubr.f32.gmra.mrb[0].mxu0 %v482
          %v484 = vpop.f32.mrb[0].mxu0
          %v485 = vadd.f32 %v413, %v484
          %v486 = vpop.f32.mrb[0].mxu0
          %487 = vdwg.mxu0
          %488 = vmatprep.subr.mxu0 0.0
          %489 = vmatpush1.msra.mxu0 1.0
          %490 = vmatprep.subr.mxu0 0.0
          %491 = vmatpush1.msra.mxu0 1.0
          %492 = vmatprep.subr.mxu0 0.0
          %493 = vmatpush1.msra.mxu0 0.0
          %494 = vmatprep.subr.mxu0 0.0
          %495 = vmatpush1.msra.mxu0 0.0
          %496 = vmatprep.subr.mxu0 0.0
          %497 = vmatpush1.msra.mxu0 0.0
          %498 = vmatprep.subr.mxu0 0.0
          %499 = vmatpush1.msra.mxu0 0.0
          %500 = vmatprep.subr.mxu0 0.0
          %501 = vmatpush1.msra.mxu0 0.0
          %502 = vmatprep.subr.mxu0 0.0
          %503 = vmatpush1.msra.mxu0 0.0
          %504 = vmatprep.subr.mxu0 0.0
          %505 = vmatpush1.msra.mxu0 0.0
          %506 = vmatprep.subr.mxu0 0.0
          %507 = vmatpush1.msra.mxu0 0.0
          %508 = vmatprep.subr.mxu0 0.0
          %509 = vmatpush1.msra.mxu0 0.0
          %510 = vmatprep.subr.mxu0 0.0
          %511 = vmatpush1.msra.mxu0 0.0
          %512 = vmatprep.subr.mxu0 0.0
          %513 = vmatpush1.msra.mxu0 0.0
          %514 = vmatprep.subr.mxu0 0.0
          %515 = vmatpush1.msra.mxu0 0.0
          %516 = vmatprep.subr.mxu0 0.0
          %517 = vmatpush1.msra.mxu0 0.0
          %518 = vmatprep.subr.mxu0 0.0
          %519 = vmatpush1.msra.mxu0 0.0
          %520 = vmatprep.subr.mxu0 0.0
          %521 = vmatpush1.msra.mxu0 0.0
          %522 = vmatprep.subr.mxu0 0.0
          %523 = vmatpush1.msra.mxu0 0.0
          %524 = vmatprep.subr.mxu0 0.0
          %525 = vmatpush1.msra.mxu0 0.0
          %526 = vmatprep.subr.mxu0 0.0
          %527 = vmatpush1.msra.mxu0 0.0
          %528 = vmatprep.subr.mxu0 0.0
          %529 = vmatpush1.msra.mxu0 0.0
          %530 = vmatprep.subr.mxu0 0.0
          %531 = vmatpush1.msra.mxu0 0.0
          %532 = vmatprep.subr.mxu0 0.0
          %533 = vmatpush1.msra.mxu0 0.0
          %534 = vmatprep.subr.mxu0 0.0
          %535 = vmatpush1.msra.mxu0 0.0
          %536 = vmatprep.subr.mxu0 0.0
          %537 = vmatpush1.msra.mxu0 0.0
          %538 = vmatprep.subr.mxu0 0.0
          %539 = vmatpush1.msra.mxu0 0.0
          %540 = vmatprep.subr.mxu0 0.0
          %541 = vmatpush1.msra.mxu0 0.0
          %542 = vmatprep.subr.mxu0 0.0
          %543 = vmatpush1.msra.mxu0 0.0
          %544 = vmatprep.subr.mxu0 0.0
          %545 = vmatpush1.msra.mxu0 0.0
          %546 = vmatprep.subr.mxu0 0.0
          %547 = vmatpush1.msra.mxu0 0.0
          %548 = vmatprep.subr.mxu0 0.0
          %549 = vmatpush1.msra.mxu0 0.0
          %550 = vmatprep.subr.mxu0 0.0
          %551 = vmatpush1.msra.mxu0 0.0
          %552 = vmatprep.mubr.f32.mxu0 0.0
          %v553 = vand.u32 %v268, 4294901760
          %v554 = vsub.f32 %v268, %v553
          %v555 = vand.u32 %v554, 4294901760
          %556 = vmatmul.mubr.f32.gmra.mrb[0].mxu0 %v555
          %v557 = vpop.f32.mrb[0].mxu0
          %v558 = vadd.f32 %v485, %v557
          %v559 = vpop.f32.mrb[0].mxu0
          %560 = vdwg.mxu0
          %561 = vmatprep.subr.mxu0 0.0
          %562 = vmatpush1.msra.mxu0 0.0
          %563 = vmatprep.subr.mxu0 0.0
          %564 = vmatpush1.msra.mxu0 0.0
          %565 = vmatprep.subr.mxu0 0.0
          %566 = vmatpush1.msra.mxu0 0.0
          %567 = vmatprep.subr.mxu0 0.0
          %568 = vmatpush1.msra.mxu0 0.0
          %569 = vmatprep.subr.mxu0 0.0
          %570 = vmatpush1.msra.mxu0 0.0
          %571 = vmatprep.subr.mxu0 0.0
          %572 = vmatpush1.msra.mxu0 0.0
          %573 = vmatprep.subr.mxu0 0.0
          %574 = vmatpush1.msra.mxu0 0.0
          %575 = vmatprep.subr.mxu0 0.0
          %576 = vmatpush1.msra.mxu0 0.0
          %577 = vmatprep.subr.mxu0 0.0
          %578 = vmatpush1.msra.mxu0 0.0
          %579 = vmatprep.subr.mxu0 0.0
          %580 = vmatpush1.msra.mxu0 0.0
          %581 = vmatprep.subr.mxu0 0.0
          %582 = vmatpush1.msra.mxu0 0.0
          %583 = vmatprep.subr.mxu0 0.0
          %584 = vmatpush1.msra.mxu0 0.0
          %585 = vmatprep.subr.mxu0 0.0
          %586 = vmatpush1.msra.mxu0 0.0
          %587 = vmatprep.subr.mxu0 0.0
          %588 = vmatpush1.msra.mxu0 0.0
          %589 = vmatprep.subr.mxu0 0.0
          %590 = vmatpush1.msra.mxu0 0.0
          %591 = vmatprep.subr.mxu0 0.0
          %592 = vmatpush1.msra.mxu0 0.0
          %593 = vmatprep.subr.mxu0 0.0
          %594 = vmatpush1.msra.mxu0 0.0
          %595 = vmatprep.subr.mxu0 0.0
          %596 = vmatpush1.msra.mxu0 0.0
          %597 = vmatprep.subr.mxu0 0.0
          %598 = vmatpush1.msra.mxu0 0.0
          %599 = vmatprep.subr.mxu0 0.0
          %600 = vmatpush1.msra.mxu0 0.0
          %601 = vmatprep.subr.mxu0 0.0
          %602 = vmatpush1.msra.mxu0 0.0
          %603 = vmatprep.subr.mxu0 0.0
          %604 = vmatpush1.msra.mxu0 0.0
          %605 = vmatprep.subr.mxu0 0.0
          %606 = vmatpush1.msra.mxu0 0.0
          %607 = vmatprep.subr.mxu0 0.0
          %608 = vmatpush1.msra.mxu0 0.0
          %609 = vmatprep.subr.mxu0 0.0
          %610 = vmatpush1.msra.mxu0 0.0
          %611 = vmatprep.subr.mxu0 0.0
          %612 = vmatpush1.msra.mxu0 0.0
          %613 = vmatprep.subr.mxu0 0.0
          %614 = vmatpush1.msra.mxu0 0.0
          %615 = vmatprep.subr.mxu0 0.0
          %616 = vmatpush1.msra.mxu0 0.0
          %617 = vmatprep.subr.mxu0 0.0
          %618 = vmatpush1.msra.mxu0 0.0
          %619 = vmatprep.subr.mxu0 0.0
          %620 = vmatpush1.msra.mxu0 0.0
          %621 = vmatprep.subr.mxu0 0.0
          %622 = vmatpush1.msra.mxu0 0.0
          %623 = vmatprep.subr.mxu0 0.0
          %624 = vmatpush1.msra.mxu0 0.0
          %625 = vmatprep.mubr.f32.mxu0 0.0
          %v626 = vand.u32 %v268, 4294901760
          %627 = vmatmul.mubr.f32.gmra.mrb[0].mxu0 %v626
          %v628 = vpop.f32.mrb[0].mxu0
          %v629 = vadd.f32 %v558, %v628
          %v630 = vpop.f32.mrb[0].mxu0
          %631 = vdwg.mxu0
          %632 = vmatprep.subr.mxu0 0.0
          %633 = vmatpush1.msra.mxu0 1.0
          %634 = vmatprep.subr.mxu0 0.0
          %635 = vmatpush1.msra.mxu0 1.0
          %636 = vmatprep.subr.mxu0 0.0
          %637 = vmatpush1.msra.mxu0 0.0
          %638 = vmatprep.subr.mxu0 0.0
          %639 = vmatpush1.msra.mxu0 0.0
          %640 = vmatprep.subr.mxu0 0.0
          %641 = vmatpush1.msra.mxu0 0.0
          %642 = vmatprep.subr.mxu0 0.0
          %643 = vmatpush1.msra.mxu0 0.0
          %644 = vmatprep.subr.mxu0 0.0
          %645 = vmatpush1.msra.mxu0 0.0
          %646 = vmatprep.subr.mxu0 0.0
          %647 = vmatpush1.msra.mxu0 0.0
          %648 = vmatprep.subr.mxu0 0.0
          %649 = vmatpush1.msra.mxu0 0.0
          %650 = vmatprep.subr.mxu0 0.0
          %651 = vmatpush1.msra.mxu0 0.0
          %652 = vmatprep.subr.mxu0 0.0
          %653 = vmatpush1.msra.mxu0 0.0
          %654 = vmatprep.subr.mxu0 0.0
          %655 = vmatpush1.msra.mxu0 0.0
          %656 = vmatprep.subr.mxu0 0.0
          %657 = vmatpush1.msra.mxu0 0.0
          %658 = vmatprep.subr.mxu0 0.0
          %659 = vmatpush1.msra.mxu0 0.0
          %660 = vmatprep.subr.mxu0 0.0
          %661 = vmatpush1.msra.mxu0 0.0
          %662 = vmatprep.subr.mxu0 0.0
          %663 = vmatpush1.msra.mxu0 0.0
          %664 = vmatprep.subr.mxu0 0.0
          %665 = vmatpush1.msra.mxu0 0.0
          %666 = vmatprep.subr.mxu0 0.0
          %667 = vmatpush1.msra.mxu0 0.0
          %668 = vmatprep.subr.mxu0 0.0
          %669 = vmatpush1.msra.mxu0 0.0
          %670 = vmatprep.subr.mxu0 0.0
          %671 = vmatpush1.msra.mxu0 0.0
          %672 = vmatprep.subr.mxu0 0.0
          %673 = vmatpush1.msra.mxu0 0.0
          %674 = vmatprep.subr.mxu0 0.0
          %675 = vmatpush1.msra.mxu0 0.0
          %676 = vmatprep.subr.mxu0 0.0
          %677 = vmatpush1.msra.mxu0 0.0
          %678 = vmatprep.subr.mxu0 0.0
          %679 = vmatpush1.msra.mxu0 0.0
          %680 = vmatprep.subr.mxu0 0.0
          %681 = vmatpush1.msra.mxu0 0.0
          %682 = vmatprep.subr.mxu0 0.0
          %683 = vmatpush1.msra.mxu0 0.0
          %684 = vmatprep.subr.mxu0 0.0
          %685 = vmatpush1.msra.mxu0 0.0
          %686 = vmatprep.subr.mxu0 0.0
          %687 = vmatpush1.msra.mxu0 0.0
          %688 = vmatprep.subr.mxu0 0.0
          %689 = vmatpush1.msra.mxu0 0.0
          %690 = vmatprep.subr.mxu0 0.0
          %691 = vmatpush1.msra.mxu0 0.0
          %692 = vmatprep.subr.mxu0 0.0
          %693 = vmatpush1.msra.mxu0 0.0
          %694 = vmatprep.subr.mxu0 0.0
          %695 = vmatpush1.msra.mxu0 0.0
          %696 = vmatprep.mubr.f32.mxu0 0.0
          %v697 = vand.u32 %v268, 4294901760
          %698 = vmatmul.mubr.f32.gmra.mrb[0].mxu0 %v697
          %v699 = vpop.f32.mrb[0].mxu0
          %v700 = vadd.f32 %v629, %v699
          %v701 = vpop.f32.mrb[0].mxu0
          %702 = vdwg.mxu0
          %v704 = vsel %vm253, %v266, 0
          %706 = vmatprep.subr.mxu0 0.0
          %707 = vmatpush1.msra.mxu0 1.0
          %708 = vmatprep.subr.mxu0 0.0
          %709 = vmatpush1.msra.mxu0 1.0
          %710 = vmatprep.subr.mxu0 0.0
          %711 = vmatpush1.msra.mxu0 0.0
          %712 = vmatprep.subr.mxu0 0.0
          %713 = vmatpush1.msra.mxu0 0.0
          %714 = vmatprep.subr.mxu0 0.0
          %715 = vmatpush1.msra.mxu0 0.0
          %716 = vmatprep.subr.mxu0 0.0
          %717 = vmatpush1.msra.mxu0 0.0
          %718 = vmatprep.subr.mxu0 0.0
          %719 = vmatpush1.msra.mxu0 0.0
          %720 = vmatprep.subr.mxu0 0.0
          %721 = vmatpush1.msra.mxu0 0.0
          %722 = vmatprep.subr.mxu0 0.0
          %723 = vmatpush1.msra.mxu0 0.0
          %724 = vmatprep.subr.mxu0 0.0
          %725 = vmatpush1.msra.mxu0 0.0
          %726 = vmatprep.subr.mxu0 0.0
          %727 = vmatpush1.msra.mxu0 0.0
          %728 = vmatprep.subr.mxu0 0.0
          %729 = vmatpush1.msra.mxu0 0.0
          %730 = vmatprep.subr.mxu0 0.0
          %731 = vmatpush1.msra.mxu0 0.0
          %732 = vmatprep.subr.mxu0 0.0
          %733 = vmatpush1.msra.mxu0 0.0
          %734 = vmatprep.subr.mxu0 0.0
          %735 = vmatpush1.msra.mxu0 0.0
          %736 = vmatprep.subr.mxu0 0.0
          %737 = vmatpush1.msra.mxu0 0.0
          %738 = vmatprep.subr.mxu0 0.0
          %739 = vmatpush1.msra.mxu0 0.0
          %740 = vmatprep.subr.mxu0 0.0
          %741 = vmatpush1.msra.mxu0 0.0
          %742 = vmatprep.subr.mxu0 0.0
          %743 = vmatpush1.msra.mxu0 0.0
          %744 = vmatprep.subr.mxu0 0.0
          %745 = vmatpush1.msra.mxu0 0.0
          %746 = vmatprep.subr.mxu0 0.0
          %747 = vmatpush1.msra.mxu0 0.0
          %748 = vmatprep.subr.mxu0 0.0
          %749 = vmatpush1.msra.mxu0 0.0
          %750 = vmatprep.subr.mxu0 0.0
          %751 = vmatpush1.msra.mxu0 0.0
          %752 = vmatprep.subr.mxu0 0.0
          %753 = vmatpush1.msra.mxu0 0.0
          %754 = vmatprep.subr.mxu0 0.0
          %755 = vmatpush1.msra.mxu0 0.0
          %756 = vmatprep.subr.mxu0 0.0
          %757 = vmatpush1.msra.mxu0 0.0
          %758 = vmatprep.subr.mxu0 0.0
          %759 = vmatpush1.msra.mxu0 0.0
          %760 = vmatprep.subr.mxu0 0.0
          %761 = vmatpush1.msra.mxu0 0.0
          %762 = vmatprep.subr.mxu0 0.0
          %763 = vmatpush1.msra.mxu0 0.0
          %764 = vmatprep.subr.mxu0 0.0
          %765 = vmatpush1.msra.mxu0 0.0
          %766 = vmatprep.subr.mxu0 0.0
          %767 = vmatpush1.msra.mxu0 0.0
          %768 = vmatprep.subr.mxu0 0.0
          %769 = vmatpush1.msra.mxu0 0.0
          %770 = vmatprep.mubr.f32.mxu0 0.0
          %v771 = vand.u32 %v704, 4294901760
          %v772 = vsub.f32 %v704, %v771
          %v773 = vand.u32 %v772, 4294901760
          %v774 = vsub.f32 %v772, %v773
          %v775 = vand.u32 %v774, 4294901760
          %776 = vmatmul.mubr.f32.gmra.mrb[0].mxu0 %v775
          %v777 = vpop.f32.mrb[0].mxu0
          %v778 = vadd.f32 0.0, %v777
          %v779 = vpop.f32.mrb[0].mxu0
          %780 = vdwg.mxu0
          %781 = vmatprep.subr.mxu0 0.0
          %782 = vmatpush1.msra.mxu0 0.0
          %783 = vmatprep.subr.mxu0 0.0
          %784 = vmatpush1.msra.mxu0 0.0
          %785 = vmatprep.subr.mxu0 0.0
          %786 = vmatpush1.msra.mxu0 0.0
          %787 = vmatprep.subr.mxu0 0.0
          %788 = vmatpush1.msra.mxu0 0.0
          %789 = vmatprep.subr.mxu0 0.0
          %790 = vmatpush1.msra.mxu0 0.0
          %791 = vmatprep.subr.mxu0 0.0
          %792 = vmatpush1.msra.mxu0 0.0
          %793 = vmatprep.subr.mxu0 0.0
          %794 = vmatpush1.msra.mxu0 0.0
          %795 = vmatprep.subr.mxu0 0.0
          %796 = vmatpush1.msra.mxu0 0.0
          %797 = vmatprep.subr.mxu0 0.0
          %798 = vmatpush1.msra.mxu0 0.0
          %799 = vmatprep.subr.mxu0 0.0
          %800 = vmatpush1.msra.mxu0 0.0
          %801 = vmatprep.subr.mxu0 0.0
          %802 = vmatpush1.msra.mxu0 0.0
          %803 = vmatprep.subr.mxu0 0.0
          %804 = vmatpush1.msra.mxu0 0.0
          %805 = vmatprep.subr.mxu0 0.0
          %806 = vmatpush1.msra.mxu0 0.0
          %807 = vmatprep.subr.mxu0 0.0
          %808 = vmatpush1.msra.mxu0 0.0
          %809 = vmatprep.subr.mxu0 0.0
          %810 = vmatpush1.msra.mxu0 0.0
          %811 = vmatprep.subr.mxu0 0.0
          %812 = vmatpush1.msra.mxu0 0.0
          %813 = vmatprep.subr.mxu0 0.0
          %814 = vmatpush1.msra.mxu0 0.0
          %815 = vmatprep.subr.mxu0 0.0
          %816 = vmatpush1.msra.mxu0 0.0
          %817 = vmatprep.subr.mxu0 0.0
          %818 = vmatpush1.msra.mxu0 0.0
          %819 = vmatprep.subr.mxu0 0.0
          %820 = vmatpush1.msra.mxu0 0.0
          %821 = vmatprep.subr.mxu0 0.0
          %822 = vmatpush1.msra.mxu0 0.0
          %823 = vmatprep.subr.mxu0 0.0
          %824 = vmatpush1.msra.mxu0 0.0
          %825 = vmatprep.subr.mxu0 0.0
          %826 = vmatpush1.msra.mxu0 0.0
          %827 = vmatprep.subr.mxu0 0.0
          %828 = vmatpush1.msra.mxu0 0.0
          %829 = vmatprep.subr.mxu0 0.0
          %830 = vmatpush1.msra.mxu0 0.0
          %831 = vmatprep.subr.mxu0 0.0
          %832 = vmatpush1.msra.mxu0 0.0
          %833 = vmatprep.subr.mxu0 0.0
          %834 = vmatpush1.msra.mxu0 0.0
          %835 = vmatprep.subr.mxu0 0.0
          %836 = vmatpush1.msra.mxu0 0.0
          %837 = vmatprep.subr.mxu0 0.0
          %838 = vmatpush1.msra.mxu0 0.0
          %839 = vmatprep.subr.mxu0 0.0
          %840 = vmatpush1.msra.mxu0 0.0
          %841 = vmatprep.subr.mxu0 0.0
          %842 = vmatpush1.msra.mxu0 0.0
          %843 = vmatprep.subr.mxu0 0.0
          %844 = vmatpush1.msra.mxu0 0.0
          %845 = vmatprep.mubr.f32.mxu0 0.0
          %v846 = vand.u32 %v704, 4294901760
          %847 = vmatmul.mubr.f32.gmra.mrb[0].mxu0 %v846
          %v848 = vpop.f32.mrb[0].mxu0
          %v849 = vadd.f32 %v778, %v848
          %v850 = vpop.f32.mrb[0].mxu0
          %851 = vdwg.mxu0
          %852 = vmatprep.subr.mxu0 0.0
          %853 = vmatpush1.msra.mxu0 0.0
          %854 = vmatprep.subr.mxu0 0.0
          %855 = vmatpush1.msra.mxu0 0.0
          %856 = vmatprep.subr.mxu0 0.0
          %857 = vmatpush1.msra.mxu0 0.0
          %858 = vmatprep.subr.mxu0 0.0
          %859 = vmatpush1.msra.mxu0 0.0
          %860 = vmatprep.subr.mxu0 0.0
          %861 = vmatpush1.msra.mxu0 0.0
          %862 = vmatprep.subr.mxu0 0.0
          %863 = vmatpush1.msra.mxu0 0.0
          %864 = vmatprep.subr.mxu0 0.0
          %865 = vmatpush1.msra.mxu0 0.0
          %866 = vmatprep.subr.mxu0 0.0
          %867 = vmatpush1.msra.mxu0 0.0
          %868 = vmatprep.subr.mxu0 0.0
          %869 = vmatpush1.msra.mxu0 0.0
          %870 = vmatprep.subr.mxu0 0.0
          %871 = vmatpush1.msra.mxu0 0.0
          %872 = vmatprep.subr.mxu0 0.0
          %873 = vmatpush1.msra.mxu0 0.0
          %874 = vmatprep.subr.mxu0 0.0
          %875 = vmatpush1.msra.mxu0 0.0
          %876 = vmatprep.subr.mxu0 0.0
          %877 = vmatpush1.msra.mxu0 0.0
          %878 = vmatprep.subr.mxu0 0.0
          %879 = vmatpush1.msra.mxu0 0.0
          %880 = vmatprep.subr.mxu0 0.0
          %881 = vmatpush1.msra.mxu0 0.0
          %882 = vmatprep.subr.mxu0 0.0
          %883 = vmatpush1.msra.mxu0 0.0
          %884 = vmatprep.subr.mxu0 0.0
          %885 = vmatpush1.msra.mxu0 0.0
          %886 = vmatprep.subr.mxu0 0.0
          %887 = vmatpush1.msra.mxu0 0.0
          %888 = vmatprep.subr.mxu0 0.0
          %889 = vmatpush1.msra.mxu0 0.0
          %890 = vmatprep.subr.mxu0 0.0
          %891 = vmatpush1.msra.mxu0 0.0
          %892 = vmatprep.subr.mxu0 0.0
          %893 = vmatpush1.msra.mxu0 0.0
          %894 = vmatprep.subr.mxu0 0.0
          %895 = vmatpush1.msra.mxu0 0.0
          %896 = vmatprep.subr.mxu0 0.0
          %897 = vmatpush1.msra.mxu0 0.0
          %898 = vmatprep.subr.mxu0 0.0
          %899 = vmatpush1.msra.mxu0 0.0
          %900 = vmatprep.subr.mxu0 0.0
          %901 = vmatpush1.msra.mxu0 0.0
          %902 = vmatprep.subr.mxu0 0.0
          %903 = vmatpush1.msra.mxu0 0.0
          %904 = vmatprep.subr.mxu0 0.0
          %905 = vmatpush1.msra.mxu0 0.0
          %906 = vmatprep.subr.mxu0 0.0
          %907 = vmatpush1.msra.mxu0 0.0
          %908 = vmatprep.subr.mxu0 0.0
          %909 = vmatpush1.msra.mxu0 0.0
          %910 = vmatprep.subr.mxu0 0.0
          %911 = vmatpush1.msra.mxu0 0.0
          %912 = vmatprep.subr.mxu0 0.0
          %913 = vmatpush1.msra.mxu0 0.0
          %914 = vmatprep.subr.mxu0 0.0
          %915 = vmatpush1.msra.mxu0 0.0
          %916 = vmatprep.mubr.f32.mxu0 0.0
          %v917 = vand.u32 %v704, 4294901760
          %v918 = vsub.f32 %v704, %v917
          %919 = vmatmul.mubr.f32.gmra.mrb[0].mxu0 %v918
          %v920 = vpop.f32.mrb[0].mxu0
          %v921 = vadd.f32 %v849, %v920
          %v922 = vpop.f32.mrb[0].mxu0
          %923 = vdwg.mxu0
          %924 = vmatprep.subr.mxu0 0.0
          %925 = vmatpush1.msra.mxu0 1.0
          %926 = vmatprep.subr.mxu0 0.0
          %927 = vmatpush1.msra.mxu0 1.0
          %928 = vmatprep.subr.mxu0 0.0
          %929 = vmatpush1.msra.mxu0 0.0
          %930 = vmatprep.subr.mxu0 0.0
          %931 = vmatpush1.msra.mxu0 0.0
          %932 = vmatprep.subr.mxu0 0.0
          %933 = vmatpush1.msra.mxu0 0.0
          %934 = vmatprep.subr.mxu0 0.0
          %935 = vmatpush1.msra.mxu0 0.0
          %936 = vmatprep.subr.mxu0 0.0
          %937 = vmatpush1.msra.mxu0 0.0
          %938 = vmatprep.subr.mxu0 0.0
          %939 = vmatpush1.msra.mxu0 0.0
          %940 = vmatprep.subr.mxu0 0.0
          %941 = vmatpush1.msra.mxu0 0.0
          %942 = vmatprep.subr.mxu0 0.0
          %943 = vmatpush1.msra.mxu0 0.0
          %944 = vmatprep.subr.mxu0 0.0
          %945 = vmatpush1.msra.mxu0 0.0
          %946 = vmatprep.subr.mxu0 0.0
          %947 = vmatpush1.msra.mxu0 0.0
          %948 = vmatprep.subr.mxu0 0.0
          %949 = vmatpush1.msra.mxu0 0.0
          %950 = vmatprep.subr.mxu0 0.0
          %951 = vmatpush1.msra.mxu0 0.0
          %952 = vmatprep.subr.mxu0 0.0
          %953 = vmatpush1.msra.mxu0 0.0
          %954 = vmatprep.subr.mxu0 0.0
          %955 = vmatpush1.msra.mxu0 0.0
          %956 = vmatprep.subr.mxu0 0.0
          %957 = vmatpush1.msra.mxu0 0.0
          %958 = vmatprep.subr.mxu0 0.0
          %959 = vmatpush1.msra.mxu0 0.0
          %960 = vmatprep.subr.mxu0 0.0
          %961 = vmatpush1.msra.mxu0 0.0
          %962 = vmatprep.subr.mxu0 0.0
          %963 = vmatpush1.msra.mxu0 0.0
          %964 = vmatprep.subr.mxu0 0.0
          %965 = vmatpush1.msra.mxu0 0.0
          %966 = vmatprep.subr.mxu0 0.0
          %967 = vmatpush1.msra.mxu0 0.0
          %968 = vmatprep.subr.mxu0 0.0
          %969 = vmatpush1.msra.mxu0 0.0
          %970 = vmatprep.subr.mxu0 0.0
          %971 = vmatpush1.msra.mxu0 0.0
          %972 = vmatprep.subr.mxu0 0.0
          %973 = vmatpush1.msra.mxu0 0.0
          %974 = vmatprep.subr.mxu0 0.0
          %975 = vmatpush1.msra.mxu0 0.0
          %976 = vmatprep.subr.mxu0 0.0
          %977 = vmatpush1.msra.mxu0 0.0
          %978 = vmatprep.subr.mxu0 0.0
          %979 = vmatpush1.msra.mxu0 0.0
          %980 = vmatprep.subr.mxu0 0.0
          %981 = vmatpush1.msra.mxu0 0.0
          %982 = vmatprep.subr.mxu0 0.0
          %983 = vmatpush1.msra.mxu0 0.0
          %984 = vmatprep.subr.mxu0 0.0
          %985 = vmatpush1.msra.mxu0 0.0
          %986 = vmatprep.subr.mxu0 0.0
          %987 = vmatpush1.msra.mxu0 0.0
          %988 = vmatprep.mubr.f32.mxu0 0.0
          %v989 = vand.u32 %v704, 4294901760
          %v990 = vsub.f32 %v704, %v989
          %v991 = vand.u32 %v990, 4294901760
          %992 = vmatmul.mubr.f32.gmra.mrb[0].mxu0 %v991
          %v993 = vpop.f32.mrb[0].mxu0
          %v994 = vadd.f32 %v921, %v993
          %v995 = vpop.f32.mrb[0].mxu0
          %996 = vdwg.mxu0
          %997 = vmatprep.subr.mxu0 0.0
          %998 = vmatpush1.msra.mxu0 0.0
          %999 = vmatprep.subr.mxu0 0.0
          %1000 = vmatpush1.msra.mxu0 0.0
          %1001 = vmatprep.subr.mxu0 0.0
          %1002 = vmatpush1.msra.mxu0 0.0
          %1003 = vmatprep.subr.mxu0 0.0
          %1004 = vmatpush1.msra.mxu0 0.0
          %1005 = vmatprep.subr.mxu0 0.0
          %1006 = vmatpush1.msra.mxu0 0.0
          %1007 = vmatprep.subr.mxu0 0.0
          %1008 = vmatpush1.msra.mxu0 0.0
          %1009 = vmatprep.subr.mxu0 0.0
          %1010 = vmatpush1.msra.mxu0 0.0
          %1011 = vmatprep.subr.mxu0 0.0
          %1012 = vmatpush1.msra.mxu0 0.0
          %1013 = vmatprep.subr.mxu0 0.0
          %1014 = vmatpush1.msra.mxu0 0.0
          %1015 = vmatprep.subr.mxu0 0.0
          %1016 = vmatpush1.msra.mxu0 0.0
          %1017 = vmatprep.subr.mxu0 0.0
          %1018 = vmatpush1.msra.mxu0 0.0
          %1019 = vmatprep.subr.mxu0 0.0
          %1020 = vmatpush1.msra.mxu0 0.0
          %1021 = vmatprep.subr.mxu0 0.0
          %1022 = vmatpush1.msra.mxu0 0.0
          %1023 = vmatprep.subr.mxu0 0.0
          %1024 = vmatpush1.msra.mxu0 0.0
          %1025 = vmatprep.subr.mxu0 0.0
          %1026 = vmatpush1.msra.mxu0 0.0
          %1027 = vmatprep.subr.mxu0 0.0
          %1028 = vmatpush1.msra.mxu0 0.0
          %1029 = vmatprep.subr.mxu0 0.0
          %1030 = vmatpush1.msra.mxu0 0.0
          %1031 = vmatprep.subr.mxu0 0.0
          %1032 = vmatpush1.msra.mxu0 0.0
          %1033 = vmatprep.subr.mxu0 0.0
          %1034 = vmatpush1.msra.mxu0 0.0
          %1035 = vmatprep.subr.mxu0 0.0
          %1036 = vmatpush1.msra.mxu0 0.0
          %1037 = vmatprep.subr.mxu0 0.0
          %1038 = vmatpush1.msra.mxu0 0.0
          %1039 = vmatprep.subr.mxu0 0.0
          %1040 = vmatpush1.msra.mxu0 0.0
          %1041 = vmatprep.subr.mxu0 0.0
          %1042 = vmatpush1.msra.mxu0 0.0
          %1043 = vmatprep.subr.mxu0 0.0
          %1044 = vmatpush1.msra.mxu0 0.0
          %1045 = vmatprep.subr.mxu0 0.0
          %1046 = vmatpush1.msra.mxu0 0.0
          %1047 = vmatprep.subr.mxu0 0.0
          %1048 = vmatpush1.msra.mxu0 0.0
          %1049 = vmatprep.subr.mxu0 0.0
          %1050 = vmatpush1.msra.mxu0 0.0
          %1051 = vmatprep.subr.mxu0 0.0
          %1052 = vmatpush1.msra.mxu0 0.0
          %1053 = vmatprep.subr.mxu0 0.0
          %1054 = vmatpush1.msra.mxu0 0.0
          %1055 = vmatprep.subr.mxu0 0.0
          %1056 = vmatpush1.msra.mxu0 0.0
          %1057 = vmatprep.subr.mxu0 0.0
          %1058 = vmatpush1.msra.mxu0 0.0
          %1059 = vmatprep.subr.mxu0 0.0
          %1060 = vmatpush1.msra.mxu0 0.0
          %1061 = vmatprep.mubr.f32.mxu0 0.0
          %v1062 = vand.u32 %v704, 4294901760
          %1063 = vmatmul.mubr.f32.gmra.mrb[0].mxu0 %v1062
          %v1064 = vpop.f32.mrb[0].mxu0
          %v1065 = vadd.f32 %v994, %v1064
          %v1066 = vpop.f32.mrb[0].mxu0
          %1067 = vdwg.mxu0
          %1068 = vmatprep.subr.mxu0 0.0
          %1069 = vmatpush1.msra.mxu0 1.0
          %1070 = vmatprep.subr.mxu0 0.0
          %1071 = vmatpush1.msra.mxu0 1.0
          %1072 = vmatprep.subr.mxu0 0.0
          %1073 = vmatpush1.msra.mxu0 0.0
          %1074 = vmatprep.subr.mxu0 0.0
          %1075 = vmatpush1.msra.mxu0 0.0
          %1076 = vmatprep.subr.mxu0 0.0
          %1077 = vmatpush1.msra.mxu0 0.0
          %1078 = vmatprep.subr.mxu0 0.0
          %1079 = vmatpush1.msra.mxu0 0.0
          %1080 = vmatprep.subr.mxu0 0.0
          %1081 = vmatpush1.msra.mxu0 0.0
          %1082 = vmatprep.subr.mxu0 0.0
          %1083 = vmatpush1.msra.mxu0 0.0
          %1084 = vmatprep.subr.mxu0 0.0
          %1085 = vmatpush1.msra.mxu0 0.0
          %1086 = vmatprep.subr.mxu0 0.0
          %1087 = vmatpush1.msra.mxu0 0.0
          %1088 = vmatprep.subr.mxu0 0.0
          %1089 = vmatpush1.msra.mxu0 0.0
          %1090 = vmatprep.subr.mxu0 0.0
          %1091 = vmatpush1.msra.mxu0 0.0
          %1092 = vmatprep.subr.mxu0 0.0
          %1093 = vmatpush1.msra.mxu0 0.0
          %1094 = vmatprep.subr.mxu0 0.0
          %1095 = vmatpush1.msra.mxu0 0.0
          %1096 = vmatprep.subr.mxu0 0.0
          %1097 = vmatpush1.msra.mxu0 0.0
          %1098 = vmatprep.subr.mxu0 0.0
          %1099 = vmatpush1.msra.mxu0 0.0
          %1100 = vmatprep.subr.mxu0 0.0
          %1101 = vmatpush1.msra.mxu0 0.0
          %1102 = vmatprep.subr.mxu0 0.0
          %1103 = vmatpush1.msra.mxu0 0.0
          %1104 = vmatprep.subr.mxu0 0.0
          %1105 = vmatpush1.msra.mxu0 0.0
          %1106 = vmatprep.subr.mxu0 0.0
          %1107 = vmatpush1.msra.mxu0 0.0
          %1108 = vmatprep.subr.mxu0 0.0
          %1109 = vmatpush1.msra.mxu0 0.0
          %1110 = vmatprep.subr.mxu0 0.0
          %1111 = vmatpush1.msra.mxu0 0.0
          %1112 = vmatprep.subr.mxu0 0.0
          %1113 = vmatpush1.msra.mxu0 0.0
          %1114 = vmatprep.subr.mxu0 0.0
          %1115 = vmatpush1.msra.mxu0 0.0
          %1116 = vmatprep.subr.mxu0 0.0
          %1117 = vmatpush1.msra.mxu0 0.0
          %1118 = vmatprep.subr.mxu0 0.0
          %1119 = vmatpush1.msra.mxu0 0.0
          %1120 = vmatprep.subr.mxu0 0.0
          %1121 = vmatpush1.msra.mxu0 0.0
          %1122 = vmatprep.subr.mxu0 0.0
          %1123 = vmatpush1.msra.mxu0 0.0
          %1124 = vmatprep.subr.mxu0 0.0
          %1125 = vmatpush1.msra.mxu0 0.0
          %1126 = vmatprep.subr.mxu0 0.0
          %1127 = vmatpush1.msra.mxu0 0.0
          %1128 = vmatprep.subr.mxu0 0.0
          %1129 = vmatpush1.msra.mxu0 0.0
          %1130 = vmatprep.subr.mxu0 0.0
          %1131 = vmatpush1.msra.mxu0 0.0
          %1132 = vmatprep.mubr.f32.mxu0 0.0
          %v1133 = vand.u32 %v704, 4294901760
          %1134 = vmatmul.mubr.f32.gmra.mrb[0].mxu0 %v1133
          %v1135 = vpop.f32.mrb[0].mxu0
          %v1136 = vadd.f32 %v1065, %v1135
          %v1137 = vpop.f32.mrb[0].mxu0
          %1138 = vdwg.mxu0
          %v1139 = vlog2.pop %v700
          %v1140 = vmul.f32 %v1139, 0.6931472
          %v1141 = vsub.f32 %v1140, %v1136
          %v1142 = vlaneseq
          %v1143 = vshrl.u32 %v1142, 7
          %v1144 = vstv %s246
          %v1145 = vadd.s32 %v1143, %v1144
          %vm1146 = vcmp.lt.s32.totalorder %v1145, 8
          %vm1147 = vcmp.ge.s32.totalorder %v252, 0
          %vm1148 = vmand %vm1146, %vm1147
          %v1149 = vsel %vm1148, %v1141, 0.0
          %vm1150 = vcmask 7168
          %v1151 = vsel %vm1150, %v1149, 0.0
          %1152 = vadd.xlane.f32.xlu0 %v1151
          %v1153 = vpop.xlane.xlu0 %1152
          %v1154 = vrot.slane %v1153, 4
          %v1155 = vadd.f32 %v1153, %v1154
          %v1156 = vrot.slane %v1155, 2
          %v1157 = vadd.f32 %v1155, %v1156
          %v1158 = vrot.slane %v1157, 1
          %v1159 = vadd.f32 %v1157, %v1158
          %s1160 = vtos %v1159
          %v1161 = vsel %vm1148, 1, 0
          %v1162 = vcvt.s32.f32 %v1161
          %v1163 = vsel %vm1150, %v1162, 0.0
          %1164 = vadd.xlane.f32.xlu0 %v1163
          %v1165 = vpop.xlane.xlu0 %1164
          %v1166 = vrot.slane %v1165, 4
          %v1167 = vadd.f32 %v1165, %v1166
          %v1168 = vrot.slane %v1167, 2
          %v1169 = vadd.f32 %v1167, %v1168
          %v1170 = vrot.slane %v1169, 1
          %v1171 = vadd.f32 %v1169, %v1170
          %s1172 = vtos %v1171
          %v1173 = vld [vmem:[%s213] sm:$0x1]
          %vm1174 = vcmp.eq.s32.totalorder %v261, 0
          %vm1175 = vcmp.eq.s32.totalorder %v261, 1
          %v1176 = vstv %s1172
          %v1177 = vsel %vm1175, %v1176, 0.0
          %v1178 = vstv %s1160
          %v1179 = vsel %vm1174, %v1178, %v1177
          %v1180 = vadd.f32 %v1173, %v1179
          %1181 = vst [vmem:[%s213] sm:$0x1] %v1180
        $region36: #{tpu_custom_call.1} parent=27 // pred_fallthru
          _
        %s1182 = sand.u32 %s113, 1
        %s1183 = scalar_lea.sflag [#allocation3], %s1182
        %s1184 = sand.u32 %s113, 1
        %s1185 = scalar_lea.vmem [#allocation2], %s1184
        // Predicated region
        $region37: #{tpu_custom_call.1} parent=27 // pred_check
          %p1186 = pneg %p123
        $region38: #{tpu_custom_call.1} parent=27 // pred_check_branch
          %1188 = sbr.rel (%p1186) target = $region40
        $region39: #{tpu_custom_call.1} parent=27 // pred_region
          %s1190 = ssub.s32 16, 16
          %1191 = vsyncadd %s1183, %s1190
          %s1192 = smul.addr %s21, 3
          %s1193 = sadd.s32 %s22, %s1192
          %s1194 = smul.addr %s1193, 16
          %s1195 = scalar_lea.hbm %s2, %s1194
          %s1197 = sshll.u32 %s1185, 4
          %s1198 = int_to_ptr.vmem [resolvable:$true] %s1197
          %1200 = dma.vmem_to_hbm [thread:$0]  %s1198, 16, %s1195, %s1183
        $region40: #{tpu_custom_call.1} parent=27 // pred_fallthru
          _
      $region28: #{tpu_custom_call.1} parent=5 // pred_fallthru
        _
      %p1201 = scmp.le.s32.totalorder 2, %s11
      // Predicated region
      $region41: #{tpu_custom_call.1} parent=5 // pred_check
        %p1202 = pneg %p1201
      $region42: #{tpu_custom_call.1} parent=5 // pred_check_branch
        %1204 = sbr.rel (%p1202) target = $region44
      $region43: #{tpu_custom_call.1} parent=5 // pred_region
        %s1205 = ssub.s32 %s11, 2
        // Predicated region
        $region45: #{tpu_custom_call.1} parent=43 // pred_check
          %p1206 = pneg %p129
        $region46: #{tpu_custom_call.1} parent=43 // pred_check_branch
          %1208 = sbr.rel (%p1206) target = $region48
        $region47: #{tpu_custom_call.1} parent=43 // pred_region
          %s1209 = sand.u32 %s114, 1
          %s1210 = scalar_lea.sflag [#allocation3], %s1209
          %s1211 = sand.u32 %s114, 1
          %s1212 = scalar_lea.vmem [#allocation2], %s1211
          %1213 = dma.done %s1210, 16
        $region48: #{tpu_custom_call.1} parent=43 // pred_fallthru
          _
      $region44: #{tpu_custom_call.1} parent=5 // pred_fallthru
        _
    $region6: #{tpu_custom_call.1} parent=1 // loop_footer
      %s15 = sadd.s32 1, %s11
    $region7: #{tpu_custom_call.1} parent=1 // loop_footer_branch
      %10 = sbr.rel target = $region3
    $region8: #{tpu_custom_call.1} parent=1 // loop_exit
      _
    %1214 = vsyncpa [#allocation3], 1
    %s1215 = scalar_lea.sflag [#allocation3], 1
    %1216 = vsyncpa %s1215, 1

</llo_original>
